<compile_context>
chip_gen: v7x
topology: tpu7x:2x2x1
jax: 0.10.0
libtpu: 0.0.40
codegen_flags: <defaults>
</compile_context>

<pallas_src>
import functools

import jax
import jax.numpy as jnp
from jax.experimental import pallas as pl
from jax.experimental.pallas import tpu as pltpu

# ----------------------------- model config -----------------------------
VOCAB_SIZE = 50
EMBED_DIM = 32
FILTER_NUM = 8
FILTER_SIZES = (3, 4, 5)
CLASS_NUM = 4
BATCH = 16
SEQ_LEN = 16
OUT_PAD = 128            # lane-dense slab width for weights / mask / biases / output
# TODO(synk): nn.Dropout is identity in eval mode; training-time dropout mask and the
# multichannel=True second-embedding path are not implemented.


# ----------------------------- kernel -----------------------------
def _textcnn_kernel(nbf, k_max, tok_ref, w_fused_ref, mask_ref, fc_w_ref, bias_ref,
                    out_ref):
    """One batch block: fused embed+conv matmul -> tap rolls -> relu/mask/pool -> FC.

    tok_ref:     (blk_b, L, 1)     int32  token ids
    w_fused_ref: (V_pad, OUT_PAD)  bf16   embedding table pre-folded into conv weights;
                                          lanes [j*nbf, (j+1)*nbf) hold tap j of all branches
    mask_ref:    (L, OUT_PAD)      f32    per-branch time-validity mask (1.0 valid / 0.0 not)
    fc_w_ref:    (nbf, OUT_PAD)    f32    FC weight, lane-padded with zeros
    bias_ref:    (2, OUT_PAD)      f32    row 0 = conv bias (lanes [0, nbf)), row 1 = FC bias
    out_ref:     (blk_b, OUT_PAD)  f32    lane-dense logits slab
    """
    blk_b, L, _ = tok_ref.shape
    v_pad, n_fused = w_fused_ref.shape

    # ---- embedding + all conv branches/taps as ONE lane-dense MXU matmul ----
    tok = tok_ref[...]                                                  # (blk_b, L, 1) i32
    vocab_iota = jax.lax.broadcasted_iota(jnp.int32, (1, 1, v_pad), 2)  # tiny row iota
    onehot = (vocab_iota == tok).astype(jnp.bfloat16)                   # (blk_b, L, v_pad)
    onehot = onehot.reshape(blk_b * L, v_pad)                           # free: L tile-aligned
    p = jnp.dot(onehot, w_fused_ref[...],
                preferred_element_type=jnp.float32)                     # (blk_b*L, 128) f32
    p = p.reshape(blk_b, L, n_fused)

    # ---- time-shifted tap accumulation (XLU sublane rolls, off the VALU path) ----
    scores = p[:, :, 0:nbf]
    for j in range(1, k_max):
        pj = p[:, :, j * nbf:(j + 1) * nbf]
        # want rolled[:, t, :] = pj[:, t + j, :]; shift L - j == -j (mod L).  Wrapped rows
        # land only at t >= L - j, which the validity mask below zeroes, so this is exact.
        scores = scores + pltpu.roll(pj, shift=L - j, axis=1)           # (blk_b, L, nbf)

    # ---- bias + ReLU + validity mask + max-pool (f32 epilogue) ----
    conv_bias = bias_ref[0:1, 0:nbf]                                    # (1, nbf)
    scores = jnp.maximum(scores + conv_bias[None], 0.0)
    scores = scores * mask_ref[:, 0:nbf][None]                          # zero invalid t (max-safe)
    pooled = jnp.max(scores, axis=1)                                    # (blk_b, nbf)

    # ---- FC head into a lane-dense (blk_b, 128) slab ----
    logits = jnp.dot(pooled, fc_w_ref[...], preferred_element_type=jnp.float32)
    out_ref[...] = (logits + bias_ref[1:2, :]).astype(out_ref.dtype)


# ----------------------------- parameter packing -----------------------------
def pack_params(emb_table, conv_params, fc_w, fc_b, *, filter_sizes=FILTER_SIZES):
    """Fold the embedding table into the conv weights and pad everything into aligned slabs.

    Returns (w_fused bf16 (V_pad, OUT_PAD), fc_w_p f32 (NBF, OUT_PAD), biases f32 (2, OUT_PAD)).
    Cache the result in real use (it only depends on the weights)."""
    V, D = emb_table.shape
    F = conv_params[0][0].shape[1]
    NBF = len(filter_sizes) * F
    K_MAX = max(filter_sizes)
    C = fc_w.shape[1]
    assert K_MAX * NBF <= OUT_PAD, "fused conv width must fit one 128-lane slab"

    V_pad = ((V + 15) // 16) * 16                       # bf16 packs 16 sublanes / tile
    table_p = jnp.zeros((V_pad, D), jnp.float32).at[:V].set(emb_table)

    # per-tap weight slab (K_MAX, D, NBF): branches fused on N, zero for taps >= branch size
    w_taps = jnp.zeros((K_MAX, D, NBF), jnp.float32)
    conv_bias = jnp.zeros((OUT_PAD,), jnp.float32)
    for bi, ((w, b), k) in enumerate(zip(conv_params, filter_sizes)):
        w_taps = w_taps.at[:k, :, bi * F:(bi + 1) * F].set(w.reshape(k, D, F))
        conv_bias = conv_bias.at[bi * F:(bi + 1) * F].set(b.reshape(-1))

    # Fold: W_fused[v, j*NBF + n] = sum_d table[v, d] * w_taps[j, d, n]  (f32, one bf16 rounding)
    w_fused = jnp.einsum("vd,kdn->vkn", table_p, w_taps,
                         precision=jax.lax.Precision.HIGHEST).reshape(V_pad, K_MAX * NBF)
    w_fused_p = (jnp.zeros((V_pad, OUT_PAD), jnp.float32)
                 .at[:, :K_MAX * NBF].set(w_fused).astype(jnp.bfloat16))

    fc_w_p = jnp.zeros((NBF, OUT_PAD), jnp.float32).at[:, :C].set(fc_w)
    fc_bias = jnp.zeros((OUT_PAD,), jnp.float32).at[:C].set(fc_b.reshape(-1))
    biases = jnp.stack([conv_bias, fc_bias], axis=0)                    # (2, 128) f32
    return w_fused_p, fc_w_p, biases


# ----------------------------- wrapper -----------------------------
def textcnn_forward(tokens, packed, *, filter_sizes=FILTER_SIZES, filter_num=FILTER_NUM,
                    class_num=CLASS_NUM, block_b=256):
    """tokens: (B, L) int32 token ids.  packed: output of pack_params.
    Returns (B, class_num) f32 logits.

    block_b: batch rows per grid step (multiple of 8).  Use 256-512 in production
    (amortizes per-step overhead, stays inside the 48 MiB scoped VMEM on v5e/v6e/v7x);
    >= 1024 only pays off after switching to a 2-D / transposed token layout because the
    (block_b, L, 1) token block is lane-padded in VMEM (~8 KiB per batch row at L=16)."""
    w_fused, fc_w_p, biases = packed
    B, L = tokens.shape
    V_pad = w_fused.shape[0]
    NBF = len(filter_sizes) * filter_num
    K_MAX = max(filter_sizes)

    assert L % 8 == 0, "seq len should be a multiple of 8 (sublane tiling)"
    assert L >= K_MAX, "seq len must cover the largest filter"
    assert block_b % 8 == 0, "block_b must be a multiple of 8 (sublane tiling)"
    block_b = min(block_b, max(8, ((B + 7) // 8) * 8))

    # Per-branch time-validity mask: position t is valid for branch bi iff t < L - fs + 1.
    t = jnp.arange(L)
    mask = jnp.zeros((L, OUT_PAD), jnp.float32)
    for bi, fs in enumerate(filter_sizes):
        valid = (t < (L - fs + 1)).astype(jnp.float32)
        mask = mask.at[:, bi * filter_num:(bi + 1) * filter_num].set(
            jnp.broadcast_to(valid[:, None], (L, filter_num)))

    # Keep num_blocks >= 2 so the "parallel" batch axis can shard across v7x's 2 TensorCores.
    num_blocks = pl.cdiv(B, block_b)
    B_pad = num_blocks * block_b
    tok_p = jnp.zeros((B_pad, L, 1), jnp.int32).at[:B, :, 0].set(tokens)

    kernel = functools.partial(_textcnn_kernel, NBF, K_MAX)
    out = pl.pallas_call(
        kernel,
        out_shape=jax.ShapeDtypeStruct((B_pad, OUT_PAD), jnp.float32),
        grid_spec=pltpu.PrefetchScalarGridSpec(
            num_scalar_prefetch=0,
            grid=(num_blocks,),
            in_specs=[
                pl.BlockSpec((block_b, L, 1), lambda i: (i, 0, 0)),    # tokens
                pl.BlockSpec((V_pad, OUT_PAD), lambda i: (0, 0)),      # fused embed+conv weights
                pl.BlockSpec((L, OUT_PAD), lambda i: (0, 0)),          # validity mask
                pl.BlockSpec((NBF, OUT_PAD), lambda i: (0, 0)),        # fc weight
                pl.BlockSpec((2, OUT_PAD), lambda i: (0, 0)),          # biases
            ],
            out_specs=pl.BlockSpec((block_b, OUT_PAD), lambda i: (i, 0)),
        ),
        compiler_params=pltpu.CompilerParams(
            dimension_semantics=("parallel",),
            # Raise the scoped VMEM limit (default 32 MiB; 16 MiB on v5e) so block_b up to
            # ~512 stays double-buffered; 48 MiB is safe on v7x's 64 MiB physical VMEM.
            vmem_limit_bytes=48 * 1024 * 1024),
    )(tok_p, w_fused, mask, fc_w_p, biases)

    return out[:B, :class_num]


# ----------------------------- references (plain JAX) -----------------------------
def textcnn_reference(emb_x, conv_params, fc_w, fc_b, *, filter_sizes=FILTER_SIZES):
    """Pure-f32 reference mimicking the PyTorch module (conv2d -> relu -> maxpool -> fc)."""
    x = emb_x[:, None, :, :]                                     # (B, 1, L, D)
    feats = []
    for (w_flat, b), k in zip(conv_params, filter_sizes):
        F_ = w_flat.shape[1]
        w_conv = w_flat.T.reshape(F_, k, EMBED_DIM)[:, None, :, :]   # OIHW
        y = jax.lax.conv_general_dilated(
            x, w_conv, window_strides=(1, 1), padding="VALID",
            dimension_numbers=("NCHW", "OIHW", "NCHW"),
            precision=jax.lax.Precision.HIGHEST)                 # (B, F, T, 1)
        y = jnp.maximum(y + b.reshape(1, F_, 1, 1), 0.0)
        y = jnp.squeeze(y, axis=3)
        feats.append(jnp.max(y, axis=2))                         # (B, F)
    feat = jnp.concatenate(feats, axis=1)
    return jnp.dot(feat, fc_w, precision=jax.lax.Precision.HIGHEST) + fc_b[0]


def textcnn_fused_reference(tokens, w_fused, conv_params, fc_w, fc_b, *,
                            filter_sizes=FILTER_SIZES, filter_num=FILTER_NUM):
    """Plain-JAX emulation using the SAME pre-folded bf16 weight slab as the kernel
    (same quantization point) -> checks the kernel mechanics (one-hot select, tap
    alignment/rolls, masking, pooling, FC) to f32 ulps."""
    B, L = tokens.shape
    NBF = len(filter_sizes) * filter_num
    p = jnp.take(w_fused.astype(jnp.float32), tokens, axis=0)    # (B, L, OUT_PAD)
    feats = []
    for bi, ((_, b), fs) in enumerate(zip(conv_params, filter_sizes)):
        T = L - fs + 1
        sc = None
        for j in range(fs):
            lo = j * NBF + bi * filter_num
            pj = p[:, j:j + T, lo:lo + filter_num]
            sc = pj if sc is None else sc + pj
        sc = jnp.maximum(sc + b.reshape(1, 1, filter_num), 0.0)
        feats.append(jnp.max(sc, axis=1))                        # (B, F)
    feat = jnp.concatenate(feats, axis=1)
    return jnp.dot(feat, fc_w, precision=jax.lax.Precision.HIGHEST) + fc_b[0]


# ----------------------------- parameter init & driver -----------------------------
def init_params(key):
    keys = jax.random.split(key, 2 + 2 * len(FILTER_SIZES) + 2)
    emb_table = jax.random.normal(keys[0], (VOCAB_SIZE, EMBED_DIM), jnp.float32) * 0.1
    conv_params = []
    for i, k in enumerate(FILTER_SIZES):
        w = jax.random.normal(keys[1 + 2 * i], (k * EMBED_DIM, FILTER_NUM), jnp.float32) * 0.1
        b = jax.random.normal(keys[2 + 2 * i], (1, FILTER_NUM), jnp.float32) * 0.1
        conv_params.append((w, b))
    fc_in = len(FILTER_SIZES) * FILTER_NUM
    fc_w = jax.random.normal(keys[-2], (fc_in, CLASS_NUM), jnp.float32) * 0.1
    fc_b = jax.random.normal(keys[-1], (1, CLASS_NUM), jnp.float32) * 0.1
    return emb_table, conv_params, fc_w, fc_b


if __name__ == "__main__":
    key = jax.random.PRNGKey(0)
    k_tok, k_par = jax.random.split(key)

    emb_table, conv_params, fc_w, fc_b = init_params(k_par)

    # Token ids (B, L) int32 — the PyTorch module's input x.
    tokens = jax.random.randint(k_tok, (BATCH, SEQ_LEN), 0, VOCAB_SIZE, dtype=jnp.int32)

    packed = pack_params(emb_table, conv_params, fc_w, fc_b)

    # block_b=8 exercises a 2-step parallel grid at this demo size; use 256-512 in production.
    logits = textcnn_forward(tokens, packed, block_b=8)
    logits = jax.block_until_ready(logits)
    assert logits.shape == (BATCH, CLASS_NUM)

    # Strict check: same fused bf16 weights / same quantization point as the kernel.
    ref_strict = textcnn_fused_reference(tokens, packed[0], conv_params, fc_w, fc_b)
    assert jnp.allclose(logits, ref_strict, atol=1e-4, rtol=1e-4), (logits, ref_strict)

    # Loose check against the pure-f32 PyTorch-style reference (one bf16 rounding of the
    # folded table@conv product inside the kernel path).
    ref_f32 = textcnn_reference(jnp.take(emb_table, tokens, axis=0), conv_params, fc_w, fc_b)
    assert jnp.allclose(logits, ref_f32, atol=2e-2, rtol=2e-2), (logits, ref_f32)

    print("KERNEL_OK")
</pallas_src>

<mosaic_0001>
module attributes {stable_mosaic.version = 11 : i64} {
  func.func @_textcnn_kernel(%arg0: i32, %arg1: memref<8x16x1xi32, #tpu.memory_space<vmem>>, %arg2: memref<64x128xbf16, #tpu.memory_space<vmem>>, %arg3: memref<16x128xf32, #tpu.memory_space<vmem>>, %arg4: memref<24x128xf32, #tpu.memory_space<vmem>>, %arg5: memref<2x128xf32, #tpu.memory_space<vmem>>, %arg6: memref<8x128xf32, #tpu.memory_space<vmem>>) attributes {dimension_semantics = [#tpu.dimension_semantics<parallel>], iteration_bounds = array<i64: 2>, scalar_prefetch = 0 : i64, scratch_operands = 0 : i64, tpu.core_type = #tpu.core_type<tc>, window_params = [{transform_indices = @transform_0, window_bounds = array<i64: 8, 16, 1>}, {pipeline_mode = #tpu.pipeline_mode<synchronous>, transform_indices = @transform_1, window_bounds = array<i64: 64, 128>}, {pipeline_mode = #tpu.pipeline_mode<synchronous>, transform_indices = @transform_2, window_bounds = array<i64: 16, 128>}, {pipeline_mode = #tpu.pipeline_mode<synchronous>, transform_indices = @transform_3, window_bounds = array<i64: 24, 128>}, {pipeline_mode = #tpu.pipeline_mode<synchronous>, transform_indices = @transform_4, window_bounds = array<i64: 2, 128>}, {transform_indices = @transform_5, window_bounds = array<i64: 8, 128>}]} {
    %c0 = arith.constant 0 : index
    %c0_0 = arith.constant 0 : index
    %c0_1 = arith.constant 0 : index
    %0 = vector.load %arg1[%c0, %c0_0, %c0_1] : memref<8x16x1xi32, #tpu.memory_space<vmem>>, vector<8x16x1xi32>
    %1 = tpu.iota {dimensions = array<i32: 2>} : vector<1x1x64xi32>
    %2 = vector.broadcast %1 : vector<1x1x64xi32> to vector<8x16x64xi32>
    %3 = vector.broadcast %0 : vector<8x16x1xi32> to vector<8x16x64xi32>
    %4 = arith.cmpi eq, %2, %3 : vector<8x16x64xi32>
    %5 = arith.extui %4 : vector<8x16x64xi1> to vector<8x16x64xi32>
    %6 = arith.sitofp %5 : vector<8x16x64xi32> to vector<8x16x64xf32>
    %7 = arith.truncf %6 : vector<8x16x64xf32> to vector<8x16x64xbf16>
    %8 = vector.shape_cast %7 : vector<8x16x64xbf16> to vector<128x64xbf16>
    %c0_2 = arith.constant 0 : index
    %c0_3 = arith.constant 0 : index
    %9 = vector.load %arg2[%c0_2, %c0_3] : memref<64x128xbf16, #tpu.memory_space<vmem>>, vector<64x128xbf16>
    %cst = arith.constant dense<0.000000e+00> : vector<128x128xf32>
    %10 = tpu.matmul %8, %9, %cst {dimension_numbers = #tpu.dot_dimension_numbers<[1], [0], [0], [1], [0, 0, 1, 1], [], []>} : vector<128x64xbf16>, vector<64x128xbf16>, vector<128x128xf32> -> vector<128x128xf32>
    %11 = vector.shape_cast %10 : vector<128x128xf32> to vector<8x16x128xf32>
    %12 = vector.extract_strided_slice %11 {offsets = [0, 0, 0], sizes = [8, 16, 24], strides = [1, 1, 1]} : vector<8x16x128xf32> to vector<8x16x24xf32>
    %13 = vector.extract_strided_slice %11 {offsets = [0, 0, 24], sizes = [8, 16, 24], strides = [1, 1, 1]} : vector<8x16x128xf32> to vector<8x16x24xf32>
    %c15_i32 = arith.constant 15 : i32
    %14 = tpu.dynamic_rotate %13 by %c15_i32 dim 1 : vector<8x16x24xf32>, i32 -> vector<8x16x24xf32>
    %15 = arith.addf %12, %14 : vector<8x16x24xf32>
    %16 = vector.extract_strided_slice %11 {offsets = [0, 0, 48], sizes = [8, 16, 24], strides = [1, 1, 1]} : vector<8x16x128xf32> to vector<8x16x24xf32>
    %c14_i32 = arith.constant 14 : i32
    %17 = tpu.dynamic_rotate %16 by %c14_i32 dim 1 : vector<8x16x24xf32>, i32 -> vector<8x16x24xf32>
    %18 = arith.addf %15, %17 : vector<8x16x24xf32>
    %19 = vector.extract_strided_slice %11 {offsets = [0, 0, 72], sizes = [8, 16, 24], strides = [1, 1, 1]} : vector<8x16x128xf32> to vector<8x16x24xf32>
    %c13_i32 = arith.constant 13 : i32
    %20 = tpu.dynamic_rotate %19 by %c13_i32 dim 1 : vector<8x16x24xf32>, i32 -> vector<8x16x24xf32>
    %21 = arith.addf %18, %20 : vector<8x16x24xf32>
    %22 = vector.extract_strided_slice %11 {offsets = [0, 0, 96], sizes = [8, 16, 24], strides = [1, 1, 1]} : vector<8x16x128xf32> to vector<8x16x24xf32>
    %c12_i32 = arith.constant 12 : i32
    %23 = tpu.dynamic_rotate %22 by %c12_i32 dim 1 : vector<8x16x24xf32>, i32 -> vector<8x16x24xf32>
    %24 = arith.addf %21, %23 : vector<8x16x24xf32>
    %c0_4 = arith.constant 0 : index
    %c0_5 = arith.constant 0 : index
    %25 = vector.load %arg5[%c0_4, %c0_5] : memref<2x128xf32, #tpu.memory_space<vmem>>, vector<1x24xf32>
    %26 = vector.shape_cast %25 : vector<1x24xf32> to vector<1x1x24xf32>
    %27 = vector.broadcast %26 : vector<1x1x24xf32> to vector<8x16x24xf32>
    %28 = arith.addf %24, %27 : vector<8x16x24xf32>
    %cst_6 = arith.constant 0.000000e+00 : f32
    %29 = vector.broadcast %cst_6 : f32 to vector<8x16x24xf32>
    %30 = arith.maximumf %28, %29 : vector<8x16x24xf32>
    %c0_7 = arith.constant 0 : index
    %c0_8 = arith.constant 0 : index
    %31 = vector.load %arg3[%c0_7, %c0_8] : memref<16x128xf32, #tpu.memory_space<vmem>>, vector<16x24xf32>
    %32 = vector.shape_cast %31 : vector<16x24xf32> to vector<1x16x24xf32>
    %33 = vector.broadcast %32 : vector<1x16x24xf32> to vector<8x16x24xf32>
    %34 = arith.mulf %30, %33 : vector<8x16x24xf32>
    %cst_9 = arith.constant dense<0xFF800000> : vector<8x24xf32>
    %35 = vector.multi_reduction <maximumf>, %34, %cst_9 [1] : vector<8x16x24xf32> to vector<8x24xf32>
    %c0_10 = arith.constant 0 : index
    %c0_11 = arith.constant 0 : index
    %36 = vector.load %arg4[%c0_10, %c0_11] : memref<24x128xf32, #tpu.memory_space<vmem>>, vector<24x128xf32>
    %cst_12 = arith.constant dense<0.000000e+00> : vector<8x128xf32>
    %37 = tpu.matmul %35, %36, %cst_12 {dimension_numbers = #tpu.dot_dimension_numbers<[1], [0], [0], [1], [0, 0, 1, 1], [], []>} : vector<8x24xf32>, vector<24x128xf32>, vector<8x128xf32> -> vector<8x128xf32>
    %c1 = arith.constant 1 : index
    %c0_13 = arith.constant 0 : index
    %38 = vector.load %arg5[%c1, %c0_13] : memref<2x128xf32, #tpu.memory_space<vmem>>, vector<1x128xf32>
    %39 = vector.broadcast %38 : vector<1x128xf32> to vector<8x128xf32>
    %40 = arith.addf %37, %39 : vector<8x128xf32>
    %c0_14 = arith.constant 0 : index
    %c0_15 = arith.constant 0 : index
    %41 = vector.load %arg6[%c0_14, %c0_15] : memref<8x128xf32, #tpu.memory_space<vmem>>, vector<8x128xf32>
    tpu.vector_store %arg6[%c0_14, %c0_15], %40 {strides = array<i32>} : memref<8x128xf32, #tpu.memory_space<vmem>>, vector<8x128xf32>,
    return
  }
  func.func @transform_0(%arg0: i32) -> (i32, i32, i32) {
    %c0_i32 = arith.constant 0 : i32
    %c0_i32_0 = arith.constant 0 : i32
    %c0_i32_1 = arith.constant 0 : i32
    return %arg0, %c0_i32, %c0_i32_0 : i32, i32, i32
  }
  func.func @transform_1(%arg0: i32) -> (i32, i32) {
    %c0_i32 = arith.constant 0 : i32
    %c0_i32_0 = arith.constant 0 : i32
    %c0_i32_1 = arith.constant 0 : i32
    return %c0_i32, %c0_i32_0 : i32, i32
  }
  func.func @transform_2(%arg0: i32) -> (i32, i32) {
    %c0_i32 = arith.constant 0 : i32
    %c0_i32_0 = arith.constant 0 : i32
    %c0_i32_1 = arith.constant 0 : i32
    return %c0_i32, %c0_i32_0 : i32, i32
  }
  func.func @transform_3(%arg0: i32) -> (i32, i32) {
    %c0_i32 = arith.constant 0 : i32
    %c0_i32_0 = arith.constant 0 : i32
    %c0_i32_1 = arith.constant 0 : i32
    return %c0_i32, %c0_i32_0 : i32, i32
  }
  func.func @transform_4(%arg0: i32) -> (i32, i32) {
    %c0_i32 = arith.constant 0 : i32
    %c0_i32_0 = arith.constant 0 : i32
    %c0_i32_1 = arith.constant 0 : i32
    return %c0_i32, %c0_i32_0 : i32, i32
  }
  func.func @transform_5(%arg0: i32) -> (i32, i32) {
    %c0_i32 = arith.constant 0 : i32
    %c0_i32_0 = arith.constant 0 : i32
    return %arg0, %c0_i32 : i32, i32
  }
}

</mosaic_0001>

<llo_original>
// kernel: tpu_custom_call.1
$region0: #{tpu_custom_call.1}
  #allocation0 [shape = 'u32[]', space=smem, size = 0x4, offset = 0x4, fixed_abs, tag = 'smem constant byte address 0x4 - core index']
  #allocation1 [shape = 'u32[144,128]{1,0:T(1,128)}', space=vmem, size = 0x12000, scoped, tag = 'internal scratch']
  %s0 = inlined_call_operand.vmem [shape: s32[16,16,1], index: 0, kind: input, shape index: {}]
  %s1 = inlined_call_operand.vmem [shape: bf16[64,128], index: 1, kind: input, shape index: {}]
  %s2 = inlined_call_operand.vmem [shape: f32[16,128], index: 2, kind: input, shape index: {}]
  %s3 = inlined_call_operand.vmem [shape: f32[24,128], index: 3, kind: input, shape index: {}]
  %s4 = inlined_call_operand.vmem [shape: f32[2,128], index: 4, kind: input, shape index: {}]
  %s5 = inlined_call_operand.hbm [shape: f32[16,128], index: 5, kind: output, shape index: {}]
  %s6 = sld [smem:[#allocation0]]
  $region53: #{tpu_custom_call.1} parent=0
    _
  %s8 = ssub.s32 1, %s6
  %s9 = scalar_select 0, %s8, %s6
  $region1: #{tpu_custom_call.1} parent=0
    #allocation2 [shape = 'u8[8192]{0}', space=vmem, size = 0x2000, scoped, tag = 'output window, operand 0']
    #allocation3 [shape = 's32[2]{0}', space=sflag, size = 0x8, scoped, tag = 'scoped memory for tpu_custom_call.1']
    %10 = vsyncpa [#allocation3], 0
    %s11 = scalar_lea.sflag [#allocation3], 1
    %12 = vsyncpa %s11, 0
    loop: start=0, step=1, limit=4
    $region2: #{tpu_custom_call.1} parent=1 // loop_pre_header
      _
    $region3: #{tpu_custom_call.1} parent=1 // loop_header
      %s14 = sphi 0, %s18
      %p15 = scmp.ge.s32.totalorder %s14, 4
      %s24 = sphi 0, %s26
      %s27 = sphi 0, %s24
      %s28 = sphi 0, %s27
      %s44 = sphi 0, %s28
      %s48 = sphi 0, %s48
      %s50 = sphi 0, %s48
      %s51 = sphi 0, %s50
      %s65 = sphi 0, %s51
      %s69 = sphi 0, %s69
      %s71 = sphi 0, %s69
      %s72 = sphi 0, %s71
      %s86 = sphi 0, %s72
      %s90 = sphi 0, %s90
      %s92 = sphi 0, %s90
      %s93 = sphi 0, %s92
      %s107 = sphi 0, %s93
      %s111 = sphi 0, %s111
      %s113 = sphi 0, %s111
      %s114 = sphi 0, %s113
      %s128 = sphi 0, %s114
      %s134 = sphi 0, %s136
      %s137 = sphi 0, %s134
      %s138 = sphi 0, %s137
      %s154 = sphi 0, %s138
    $region4: #{tpu_custom_call.1} parent=1 // loop_header_branch
      %17 = sbr.rel (%p15) target = $region8
    $region5: #{tpu_custom_call.1} parent=1 // loop_body
      %s19 = ssub.s32 %s14, 1
      %s20 = ssub.s32 %s14, 2
      %s21 = sadd.s32 %s14, 1
      %s22 = ssub.s32 %s14, %s21
      %p23 = scmp.eq.s32.totalorder %s22, 0
      %s25 = sadd.s32 %s24, 1
      %s26 = scalar_select %p23, %s24, %s25
      %p29 = pneg %p23
      %p30 = scmp.eq.s32.totalorder %s14, 1
      %p31 = por %p29, %p30
      %p32 = scmp.ne.s32.totalorder %s24, %s27
      %p33 = scmp.eq.s32.totalorder %s14, 0
      %p34 = por %p32, %p33
      %p35 = scmp.ne.s32.totalorder %s24, %s27
      %p36 = scmp.eq.s32.totalorder %s19, 1
      %p37 = por %p35, %p36
      %p38 = scmp.ne.s32.totalorder %s27, %s28
      %p39 = scmp.eq.s32.totalorder %s19, 0
      %p40 = por %p38, %p39
      %p41 = scmp.ne.s32.totalorder %s27, %s28
      %p42 = scmp.eq.s32.totalorder %s20, 1
      %p43 = por %p41, %p42
      %p45 = scmp.ne.s32.totalorder %s28, %s44
      %p46 = scmp.eq.s32.totalorder %s20, 0
      %p47 = por %p45, %p46
      %s49 = sadd.s32 %s48, 1
      %p52 = scmp.eq.s32.totalorder %s14, 1
      %p53 = scmp.ne.s32.totalorder %s48, %s50
      %p54 = scmp.eq.s32.totalorder %s14, 0
      %p55 = por %p53, %p54
      %p56 = scmp.ne.s32.totalorder %s48, %s50
      %p57 = scmp.eq.s32.totalorder %s19, 1
      %p58 = por %p56, %p57
      %p59 = scmp.ne.s32.totalorder %s50, %s51
      %p60 = scmp.eq.s32.totalorder %s19, 0
      %p61 = por %p59, %p60
      %p62 = scmp.ne.s32.totalorder %s50, %s51
      %p63 = scmp.eq.s32.totalorder %s20, 1
      %p64 = por %p62, %p63
      %p66 = scmp.ne.s32.totalorder %s51, %s65
      %p67 = scmp.eq.s32.totalorder %s20, 0
      %p68 = por %p66, %p67
      %s70 = sadd.s32 %s69, 1
      %p73 = scmp.eq.s32.totalorder %s14, 1
      %p74 = scmp.ne.s32.totalorder %s69, %s71
      %p75 = scmp.eq.s32.totalorder %s14, 0
      %p76 = por %p74, %p75
      %p77 = scmp.ne.s32.totalorder %s69, %s71
      %p78 = scmp.eq.s32.totalorder %s19, 1
      %p79 = por %p77, %p78
      %p80 = scmp.ne.s32.totalorder %s71, %s72
      %p81 = scmp.eq.s32.totalorder %s19, 0
      %p82 = por %p80, %p81
      %p83 = scmp.ne.s32.totalorder %s71, %s72
      %p84 = scmp.eq.s32.totalorder %s20, 1
      %p85 = por %p83, %p84
      %p87 = scmp.ne.s32.totalorder %s72, %s86
      %p88 = scmp.eq.s32.totalorder %s20, 0
      %p89 = por %p87, %p88
      %s91 = sadd.s32 %s90, 1
      %p94 = scmp.eq.s32.totalorder %s14, 1
      %p95 = scmp.ne.s32.totalorder %s90, %s92
      %p96 = scmp.eq.s32.totalorder %s14, 0
      %p97 = por %p95, %p96
      %p98 = scmp.ne.s32.totalorder %s90, %s92
      %p99 = scmp.eq.s32.totalorder %s19, 1
      %p100 = por %p98, %p99
      %p101 = scmp.ne.s32.totalorder %s92, %s93
      %p102 = scmp.eq.s32.totalorder %s19, 0
      %p103 = por %p101, %p102
      %p104 = scmp.ne.s32.totalorder %s92, %s93
      %p105 = scmp.eq.s32.totalorder %s20, 1
      %p106 = por %p104, %p105
      %p108 = scmp.ne.s32.totalorder %s93, %s107
      %p109 = scmp.eq.s32.totalorder %s20, 0
      %p110 = por %p108, %p109
      %s112 = sadd.s32 %s111, 1
      %p115 = scmp.eq.s32.totalorder %s14, 1
      %p116 = scmp.ne.s32.totalorder %s111, %s113
      %p117 = scmp.eq.s32.totalorder %s14, 0
      %p118 = por %p116, %p117
      %p119 = scmp.ne.s32.totalorder %s111, %s113
      %p120 = scmp.eq.s32.totalorder %s19, 1
      %p121 = por %p119, %p120
      %p122 = scmp.ne.s32.totalorder %s113, %s114
      %p123 = scmp.eq.s32.totalorder %s19, 0
      %p124 = por %p122, %p123
      %p125 = scmp.ne.s32.totalorder %s113, %s114
      %p126 = scmp.eq.s32.totalorder %s20, 1
      %p127 = por %p125, %p126
      %p129 = scmp.ne.s32.totalorder %s114, %s128
      %p130 = scmp.eq.s32.totalorder %s20, 0
      %p131 = por %p129, %p130
      %s132 = ssub.s32 %s14, %s21
      %p133 = scmp.eq.s32.totalorder %s132, 0
      %s135 = sadd.s32 %s134, 1
      %s136 = scalar_select %p133, %s134, %s135
      %p139 = pneg %p133
      %p140 = scmp.eq.s32.totalorder %s14, 1
      %p141 = por %p139, %p140
      %p142 = scmp.ne.s32.totalorder %s134, %s137
      %p143 = scmp.eq.s32.totalorder %s14, 0
      %p144 = por %p142, %p143
      %p145 = scmp.ne.s32.totalorder %s134, %s137
      %p146 = scmp.eq.s32.totalorder %s19, 1
      %p147 = por %p145, %p146
      %p148 = scmp.ne.s32.totalorder %s137, %s138
      %p149 = scmp.eq.s32.totalorder %s19, 0
      %p150 = por %p148, %p149
      %p151 = scmp.ne.s32.totalorder %s137, %s138
      %p152 = scmp.eq.s32.totalorder %s20, 1
      %p153 = por %p151, %p152
      %p155 = scmp.ne.s32.totalorder %s138, %s154
      %p156 = scmp.eq.s32.totalorder %s20, 0
      %p157 = por %p155, %p156
      %p158 = scmp.le.s32.totalorder 1, %s14
      %p159 = scmp.lt.s32.totalorder %s14, 3
      %p160 = pnand %p158, %p159
      %p161 = pneg %p160
      // Predicated region
      $region9: #{tpu_custom_call.1} parent=5 // pred_check
        _
      $region10: #{tpu_custom_call.1} parent=5 // pred_check_branch
        %163 = sbr.rel (%p160) target = $region12
      $region11: #{tpu_custom_call.1} parent=5 // pred_region
        %s164 = ssub.s32 %s14, 1
        // Predicated region
        $region13: #{tpu_custom_call.1} parent=11 // pred_check
          %p165 = pneg %p61
        $region14: #{tpu_custom_call.1} parent=11 // pred_check_branch
          %167 = sbr.rel (%p165) target = $region16
        $region15: #{tpu_custom_call.1} parent=11 // pred_region
          _
        $region16: #{tpu_custom_call.1} parent=11 // pred_fallthru
          _
        // Predicated region
        $region17: #{tpu_custom_call.1} parent=11 // pred_check
          %p168 = pneg %p82
        $region18: #{tpu_custom_call.1} parent=11 // pred_check_branch
          %170 = sbr.rel (%p168) target = $region20
        $region19: #{tpu_custom_call.1} parent=11 // pred_region
          _
        $region20: #{tpu_custom_call.1} parent=11 // pred_fallthru
          _
        // Predicated region
        $region21: #{tpu_custom_call.1} parent=11 // pred_check
          %p171 = pneg %p103
        $region22: #{tpu_custom_call.1} parent=11 // pred_check_branch
          %173 = sbr.rel (%p171) target = $region24
        $region23: #{tpu_custom_call.1} parent=11 // pred_region
          _
        $region24: #{tpu_custom_call.1} parent=11 // pred_fallthru
          _
        // Predicated region
        $region25: #{tpu_custom_call.1} parent=11 // pred_check
          %p174 = pneg %p124
        $region26: #{tpu_custom_call.1} parent=11 // pred_check_branch
          %176 = sbr.rel (%p174) target = $region28
        $region27: #{tpu_custom_call.1} parent=11 // pred_region
          _
        $region28: #{tpu_custom_call.1} parent=11 // pred_fallthru
          _
      $region12: #{tpu_custom_call.1} parent=5 // pred_fallthru
        _
      %p177 = scmp.lt.s32.totalorder %s14, 2
      // Predicated region
      $region29: #{tpu_custom_call.1} parent=5 // pred_check
        %p178 = pneg %p177
      $region30: #{tpu_custom_call.1} parent=5 // pred_check_branch
        %180 = sbr.rel (%p178) target = $region32
      $region31: #{tpu_custom_call.1} parent=5 // pred_region
        // Predicated region
        $region33: #{tpu_custom_call.1} parent=31 // pred_check
          %p181 = pneg %p34
        $region34: #{tpu_custom_call.1} parent=31 // pred_check_branch
          %183 = sbr.rel (%p181) target = $region36
        $region35: #{tpu_custom_call.1} parent=31 // pred_region
          %s184 = smul.u32 8, %s14
          %p185 = scmp.lt.s32.totalorder %s184, 15
          %s186 = scalar_select %p185, %s184, 15
          %s187 = smul.addr %s186, 2
          %s188 = smul.addr %s187, 8
          %s189 = scalar_lea.vmem %s0, %s188
          %s190 = smul.u32 8, %s14
        $region36: #{tpu_custom_call.1} parent=31 // pred_fallthru
          _
      $region32: #{tpu_custom_call.1} parent=5 // pred_fallthru
        _
      %p191 = scmp.le.s32.totalorder 1, %s14
      %p192 = scmp.lt.s32.totalorder %s14, 3
      %p193 = pnand %p191, %p192
      %p194 = pneg %p193
      // Predicated region
      $region37: #{tpu_custom_call.1} parent=5 // pred_check
        _
      $region38: #{tpu_custom_call.1} parent=5 // pred_check_branch
        %196 = sbr.rel (%p193) target = $region40
      $region39: #{tpu_custom_call.1} parent=5 // pred_region
        %s197 = ssub.s32 %s14, 1
        %s198 = smul.u32 8, %s19
        %p199 = scmp.lt.s32.totalorder %s198, 15
        %s200 = scalar_select %p199, %s198, 15
        %s201 = smul.addr %s200, 2
        %s202 = smul.addr %s201, 8
        %s203 = scalar_lea.vmem %s0, %s202
        %p204 = pneg %p40
        %p205 = pneg %p37
        %p206 = pneg %p61
        %p207 = pneg %p58
        %p208 = pneg %p82
        %p209 = pneg %p79
        %p210 = pneg %p103
        %p211 = pneg %p100
        %p212 = pneg %p124
        %p213 = pneg %p121
        %p214 = pneg %p150
        %p215 = pneg %p147
        %s216 = sand.u32 %s137, 1
        %s217 = scalar_lea.sflag [#allocation3], %s216
        %s218 = sand.u32 %s137, 1
        %s219 = smul.addr %s218, 8
        %s220 = scalar_lea.vmem [#allocation2], %s219
        %s221 = smul.u32 8, %s19
        %p222 = scmp.lt.s32.totalorder %s221, 15
        %s223 = scalar_select %p222, %s221, 15
        %s224 = smul.addr %s223, 2
        %s225 = smul.addr %s224, 8
        %s226 = scalar_lea.vmem %s0, %s225
        %s227 = smul.u32 8, %s19
        %v229 = vld [vmem:[%s226] sm:$0xff]
        %v230 = vld [vmem:[%s226 + $0x8] sm:$0xff]
        %v231 = vld [vmem:[%s226 + $0x10] sm:$0xff]
        %v232 = vld [vmem:[%s226 + $0x18] sm:$0xff]
        %v233 = vld [vmem:[%s226 + $0x20] sm:$0xff]
        %v234 = vld [vmem:[%s226 + $0x28] sm:$0xff]
        %v235 = vld [vmem:[%s226 + $0x30] sm:$0xff]
        %v236 = vld [vmem:[%s226 + $0x38] sm:$0xff]
        %v237 = vld [vmem:[%s226 + $0x40] sm:$0xff]
        %v238 = vld [vmem:[%s226 + $0x48] sm:$0xff]
        %v239 = vld [vmem:[%s226 + $0x50] sm:$0xff]
        %v240 = vld [vmem:[%s226 + $0x58] sm:$0xff]
        %v241 = vld [vmem:[%s226 + $0x60] sm:$0xff]
        %v242 = vld [vmem:[%s226 + $0x68] sm:$0xff]
        %v243 = vld [vmem:[%s226 + $0x70] sm:$0xff]
        %v244 = vld [vmem:[%s226 + $0x78] sm:$0xff]
        %v245 = vlaneseq
        %v246 = vand.u32 %v245, 127
        %247 = vset.pattern.permute.xlu0 0
        %248 = vperm.xlu0 %247, %v229
        %v249 = vpop.permute.xlu0 %248
        %250 = vset.pattern.permute.xlu0 0
        %251 = vperm.xlu0 %250, %v230
        %v252 = vpop.permute.xlu0 %251
        %253 = vset.pattern.permute.xlu0 0
        %254 = vperm.xlu0 %253, %v231
        %v255 = vpop.permute.xlu0 %254
        %256 = vset.pattern.permute.xlu0 0
        %257 = vperm.xlu0 %256, %v232
        %v258 = vpop.permute.xlu0 %257
        %259 = vset.pattern.permute.xlu0 0
        %260 = vperm.xlu0 %259, %v233
        %v261 = vpop.permute.xlu0 %260
        %262 = vset.pattern.permute.xlu0 0
        %263 = vperm.xlu0 %262, %v234
        %v264 = vpop.permute.xlu0 %263
        %265 = vset.pattern.permute.xlu0 0
        %266 = vperm.xlu0 %265, %v235
        %v267 = vpop.permute.xlu0 %266
        %268 = vset.pattern.permute.xlu0 0
        %269 = vperm.xlu0 %268, %v236
        %v270 = vpop.permute.xlu0 %269
        %271 = vset.pattern.permute.xlu0 0
        %272 = vperm.xlu0 %271, %v237
        %v273 = vpop.permute.xlu0 %272
        %274 = vset.pattern.permute.xlu0 0
        %275 = vperm.xlu0 %274, %v238
        %v276 = vpop.permute.xlu0 %275
        %277 = vset.pattern.permute.xlu0 0
        %278 = vperm.xlu0 %277, %v239
        %v279 = vpop.permute.xlu0 %278
        %280 = vset.pattern.permute.xlu0 0
        %281 = vperm.xlu0 %280, %v240
        %v282 = vpop.permute.xlu0 %281
        %283 = vset.pattern.permute.xlu0 0
        %284 = vperm.xlu0 %283, %v241
        %v285 = vpop.permute.xlu0 %284
        %286 = vset.pattern.permute.xlu0 0
        %287 = vperm.xlu0 %286, %v242
        %v288 = vpop.permute.xlu0 %287
        %289 = vset.pattern.permute.xlu0 0
        %290 = vperm.xlu0 %289, %v243
        %v291 = vpop.permute.xlu0 %290
        %292 = vset.pattern.permute.xlu0 0
        %293 = vperm.xlu0 %292, %v244
        %v294 = vpop.permute.xlu0 %293
        %vm295 = vcmp.eq.s32.totalorder %v246, %v249
        %vm296 = vcmp.eq.s32.totalorder %v246, %v252
        %vm297 = vcmp.eq.s32.totalorder %v246, %v255
        %vm298 = vcmp.eq.s32.totalorder %v246, %v258
        %vm299 = vcmp.eq.s32.totalorder %v246, %v261
        %vm300 = vcmp.eq.s32.totalorder %v246, %v264
        %vm301 = vcmp.eq.s32.totalorder %v246, %v267
        %vm302 = vcmp.eq.s32.totalorder %v246, %v270
        %vm303 = vcmp.eq.s32.totalorder %v246, %v273
        %vm304 = vcmp.eq.s32.totalorder %v246, %v276
        %vm305 = vcmp.eq.s32.totalorder %v246, %v279
        %vm306 = vcmp.eq.s32.totalorder %v246, %v282
        %vm307 = vcmp.eq.s32.totalorder %v246, %v285
        %vm308 = vcmp.eq.s32.totalorder %v246, %v288
        %vm309 = vcmp.eq.s32.totalorder %v246, %v291
        %vm310 = vcmp.eq.s32.totalorder %v246, %v294
        %v311 = vsel %vm295, 1, 0
        %v312 = vsel %vm296, 1, 0
        %v313 = vsel %vm297, 1, 0
        %v314 = vsel %vm298, 1, 0
        %v315 = vsel %vm299, 1, 0
        %v316 = vsel %vm300, 1, 0
        %v317 = vsel %vm301, 1, 0
        %v318 = vsel %vm302, 1, 0
        %v319 = vsel %vm303, 1, 0
        %v320 = vsel %vm304, 1, 0
        %v321 = vsel %vm305, 1, 0
        %v322 = vsel %vm306, 1, 0
        %v323 = vsel %vm307, 1, 0
        %v324 = vsel %vm308, 1, 0
        %v325 = vsel %vm309, 1, 0
        %v326 = vsel %vm310, 1, 0
        %v327 = vcvt.s32.f32 %v311
        %v328 = vcvt.s32.f32 %v312
        %v329 = vcvt.s32.f32 %v313
        %v330 = vcvt.s32.f32 %v314
        %v331 = vcvt.s32.f32 %v315
        %v332 = vcvt.s32.f32 %v316
        %v333 = vcvt.s32.f32 %v317
        %v334 = vcvt.s32.f32 %v318
        %v335 = vcvt.s32.f32 %v319
        %v336 = vcvt.s32.f32 %v320
        %v337 = vcvt.s32.f32 %v321
        %v338 = vcvt.s32.f32 %v322
        %v339 = vcvt.s32.f32 %v323
        %v340 = vcvt.s32.f32 %v324
        %v341 = vcvt.s32.f32 %v325
        %v342 = vcvt.s32.f32 %v326
        %v343 = vpack.c.bf16 %v328, %v327
        %v344 = vpack.c.bf16 %v330, %v329
        %v345 = vpack.c.bf16 %v332, %v331
        %v346 = vpack.c.bf16 %v334, %v333
        %v347 = vpack.c.bf16 %v336, %v335
        %v348 = vpack.c.bf16 %v338, %v337
        %v349 = vpack.c.bf16 %v340, %v339
        %v350 = vpack.c.bf16 %v342, %v341
        %v351 = vld [vmem:[%s1] sm:$0xf]
        %v352 = vld [vmem:[%s1 + $0x4] sm:$0xf]
        %v353 = vld [vmem:[%s1 + $0x8] sm:$0xf]
        %v354 = vld [vmem:[%s1 + $0xc] sm:$0xf]
        %v355 = vld [vmem:[%s1 + $0x10] sm:$0xf]
        %v356 = vld [vmem:[%s1 + $0x14] sm:$0xf]
        %v357 = vld [vmem:[%s1 + $0x18] sm:$0xf]
        %v358 = vld [vmem:[%s1 + $0x1c] sm:$0xf]
        %v367 = vunpack.c.l.b16 %v351
        %v368 = vunpack.c.l.b16 %v352
        %v369 = vunpack.c.l.b16 %v353
        %v370 = vunpack.c.l.b16 %v354
        %v371 = vunpack.c.l.b16 %v355
        %v372 = vunpack.c.l.b16 %v356
        %v373 = vunpack.c.l.b16 %v357
        %v374 = vunpack.c.l.b16 %v358
        %v375 = vpack.c.b16 %v368, %v367
        %v376 = vpack.c.b16 %v370, %v369
        %v377 = vpack.c.b16 %v372, %v371
        %v378 = vpack.c.b16 %v374, %v373
        %vm383 = vcmask 523264
        %v385 = vsel %vm383, %v343, 0
        %v388 = vsel %vm383, %v344, 0
        %v391 = vsel %vm383, %v345, 0
        %v394 = vsel %vm383, %v346, 0
        %v397 = vsel %vm383, %v347, 0
        %v400 = vsel %vm383, %v348, 0
        %v403 = vsel %vm383, %v349, 0
        %v406 = vsel %vm383, %v350, 0
        %408 = vmatprep.subr.bf16.mxu0 0
        %409 = vmatpush1.bf16.msra.mxu0 %v375
        %410 = vmatprep.subr.bf16.mxu0 0
        %411 = vmatpush1.bf16.msra.mxu0 %v376
        %412 = vmatprep.subr.bf16.mxu0 0
        %413 = vmatpush1.bf16.msra.mxu0 %v377
        %414 = vmatprep.subr.bf16.mxu0 0
        %415 = vmatpush1.bf16.msra.mxu0 %v378
        %416 = vmatprep.subr.bf16.mxu0 0
        %417 = vmatpush1.bf16.msra.mxu0 0
        %418 = vmatprep.subr.bf16.mxu0 0
        %419 = vmatpush1.bf16.msra.mxu0 0
        %420 = vmatprep.subr.bf16.mxu0 0
        %421 = vmatpush1.bf16.msra.mxu0 0
        %422 = vmatprep.subr.bf16.mxu0 0
        %423 = vmatpush1.bf16.msra.mxu0 0
        %424 = vmatprep.subr.bf16.mxu0 0
        %425 = vmatpush1.bf16.msra.mxu0 0
        %426 = vmatprep.subr.bf16.mxu0 0
        %427 = vmatpush1.bf16.msra.mxu0 0
        %428 = vmatprep.subr.bf16.mxu0 0
        %429 = vmatpush1.bf16.msra.mxu0 0
        %430 = vmatprep.subr.bf16.mxu0 0
        %431 = vmatpush1.bf16.msra.mxu0 0
        %432 = vmatprep.subr.bf16.mxu0 0
        %433 = vmatpush1.bf16.msra.mxu0 0
        %434 = vmatprep.subr.bf16.mxu0 0
        %435 = vmatpush1.bf16.msra.mxu0 0
        %436 = vmatprep.subr.bf16.mxu0 0
        %437 = vmatpush1.bf16.msra.mxu0 0
        %438 = vmatprep.subr.bf16.mxu0 0
        %439 = vmatpush1.bf16.msra.mxu0 0
        %440 = vmatprep.mubr.bf16.mxu0 0
        %441 = vmatmul.mubr.bf16.gmra.mrb[0].mxu0 %v385
        %v442 = vpop.f32.mrb[0].mxu0
        %v443 = vadd.f32 0.0, %v442
        %v444 = vpop.f32.mrb[0].mxu0
        %v445 = vpop.f32.mrb[0].mxu0
        %v446 = vadd.f32 0.0, %v445
        %v447 = vpop.f32.mrb[0].mxu0
        %448 = vmatprep.mubr.bf16.mxu0 0
        %449 = vmatmul.mubr.bf16.gmra.mrb[0].mxu0 %v388
        %v450 = vpop.f32.mrb[0].mxu0
        %v451 = vadd.f32 0.0, %v450
        %v452 = vpop.f32.mrb[0].mxu0
        %v453 = vpop.f32.mrb[0].mxu0
        %v454 = vadd.f32 0.0, %v453
        %v455 = vpop.f32.mrb[0].mxu0
        %456 = vmatprep.mubr.bf16.mxu0 0
        %457 = vmatmul.mubr.bf16.gmra.mrb[0].mxu0 %v391
        %v458 = vpop.f32.mrb[0].mxu0
        %v459 = vadd.f32 0.0, %v458
        %v460 = vpop.f32.mrb[0].mxu0
        %v461 = vpop.f32.mrb[0].mxu0
        %v462 = vadd.f32 0.0, %v461
        %v463 = vpop.f32.mrb[0].mxu0
        %464 = vmatprep.mubr.bf16.mxu0 0
        %465 = vmatmul.mubr.bf16.gmra.mrb[0].mxu0 %v394
        %v466 = vpop.f32.mrb[0].mxu0
        %v467 = vadd.f32 0.0, %v466
        %v468 = vpop.f32.mrb[0].mxu0
        %v469 = vpop.f32.mrb[0].mxu0
        %v470 = vadd.f32 0.0, %v469
        %v471 = vpop.f32.mrb[0].mxu0
        %472 = vmatprep.mubr.bf16.mxu0 0
        %473 = vmatmul.mubr.bf16.gmra.mrb[0].mxu0 %v397
        %v474 = vpop.f32.mrb[0].mxu0
        %v475 = vadd.f32 0.0, %v474
        %v476 = vpop.f32.mrb[0].mxu0
        %v477 = vpop.f32.mrb[0].mxu0
        %v478 = vadd.f32 0.0, %v477
        %v479 = vpop.f32.mrb[0].mxu0
        %480 = vmatprep.mubr.bf16.mxu0 0
        %481 = vmatmul.mubr.bf16.gmra.mrb[0].mxu0 %v400
        %v482 = vpop.f32.mrb[0].mxu0
        %v483 = vadd.f32 0.0, %v482
        %v484 = vpop.f32.mrb[0].mxu0
        %v485 = vpop.f32.mrb[0].mxu0
        %v486 = vadd.f32 0.0, %v485
        %v487 = vpop.f32.mrb[0].mxu0
        %488 = vmatprep.mubr.bf16.mxu0 0
        %489 = vmatmul.mubr.bf16.gmra.mrb[0].mxu0 %v403
        %v490 = vpop.f32.mrb[0].mxu0
        %v491 = vadd.f32 0.0, %v490
        %v492 = vpop.f32.mrb[0].mxu0
        %v493 = vpop.f32.mrb[0].mxu0
        %v494 = vadd.f32 0.0, %v493
        %v495 = vpop.f32.mrb[0].mxu0
        %496 = vmatprep.mubr.bf16.mxu0 0
        %497 = vmatmul.mubr.bf16.gmra.mrb[0].mxu0 %v406
        %v498 = vpop.f32.mrb[0].mxu0
        %v499 = vadd.f32 0.0, %v498
        %v500 = vpop.f32.mrb[0].mxu0
        %v501 = vpop.f32.mrb[0].mxu0
        %v502 = vadd.f32 0.0, %v501
        %v503 = vpop.f32.mrb[0].mxu0
        %504 = vdwg.mxu0
        %521 = vrot.lane.b32.xlu0 %v443, 104
        %v522 = vpop.permute.xlu0 %521
        %523 = vrot.lane.b32.xlu0 %v446, 104
        %v524 = vpop.permute.xlu0 %523
        %525 = vrot.lane.b32.xlu0 %v451, 104
        %v526 = vpop.permute.xlu0 %525
        %527 = vrot.lane.b32.xlu0 %v454, 104
        %v528 = vpop.permute.xlu0 %527
        %529 = vrot.lane.b32.xlu0 %v459, 104
        %v530 = vpop.permute.xlu0 %529
        %531 = vrot.lane.b32.xlu0 %v462, 104
        %v532 = vpop.permute.xlu0 %531
        %533 = vrot.lane.b32.xlu0 %v467, 104
        %v534 = vpop.permute.xlu0 %533
        %535 = vrot.lane.b32.xlu0 %v470, 104
        %v536 = vpop.permute.xlu0 %535
        %537 = vrot.lane.b32.xlu0 %v475, 104
        %v538 = vpop.permute.xlu0 %537
        %539 = vrot.lane.b32.xlu0 %v478, 104
        %v540 = vpop.permute.xlu0 %539
        %541 = vrot.lane.b32.xlu0 %v483, 104
        %v542 = vpop.permute.xlu0 %541
        %543 = vrot.lane.b32.xlu0 %v486, 104
        %v544 = vpop.permute.xlu0 %543
        %545 = vrot.lane.b32.xlu0 %v491, 104
        %v546 = vpop.permute.xlu0 %545
        %547 = vrot.lane.b32.xlu0 %v494, 104
        %v548 = vpop.permute.xlu0 %547
        %549 = vrot.lane.b32.xlu0 %v499, 104
        %v550 = vpop.permute.xlu0 %549
        %551 = vrot.lane.b32.xlu0 %v502, 104
        %v552 = vpop.permute.xlu0 %551
        %v569 = vrot.slane %v522, 1
        %v570 = vrot.slane %v526, 1
        %v571 = vrot.slane %v530, 1
        %v572 = vrot.slane %v534, 1
        %v573 = vrot.slane %v538, 1
        %v574 = vrot.slane %v542, 1
        %v575 = vrot.slane %v546, 1
        %v576 = vrot.slane %v550, 1
        %v577 = vrot.slane %v524, 1
        %v578 = vrot.slane %v528, 1
        %v579 = vrot.slane %v532, 1
        %v580 = vrot.slane %v536, 1
        %v581 = vrot.slane %v540, 1
        %v582 = vrot.slane %v544, 1
        %v583 = vrot.slane %v548, 1
        %v584 = vrot.slane %v552, 1
        %v585 = vlaneseq
        %v586 = vshrl.u32 %v585, 7
        %vm587 = vcmp.lt.s32.totalorder %v586, 7
        %v588 = vsel %vm587, %v569, %v577
        %v589 = vsel %vm587, %v570, %v578
        %v590 = vsel %vm587, %v571, %v579
        %v591 = vsel %vm587, %v572, %v580
        %v592 = vsel %vm587, %v573, %v581
        %v593 = vsel %vm587, %v574, %v582
        %v594 = vsel %vm587, %v575, %v583
        %v595 = vsel %vm587, %v576, %v584
        %v596 = vsel %vm587, %v577, %v569
        %v597 = vsel %vm587, %v578, %v570
        %v598 = vsel %vm587, %v579, %v571
        %v599 = vsel %vm587, %v580, %v572
        %v600 = vsel %vm587, %v581, %v573
        %v601 = vsel %vm587, %v582, %v574
        %v602 = vsel %vm587, %v583, %v575
        %v603 = vsel %vm587, %v584, %v576
        %v604 = vadd.f32 %v443, %v588
        %v605 = vadd.f32 %v446, %v596
        %v606 = vadd.f32 %v451, %v589
        %v607 = vadd.f32 %v454, %v597
        %v608 = vadd.f32 %v459, %v590
        %v609 = vadd.f32 %v462, %v598
        %v610 = vadd.f32 %v467, %v591
        %v611 = vadd.f32 %v470, %v599
        %v612 = vadd.f32 %v475, %v592
        %v613 = vadd.f32 %v478, %v600
        %v614 = vadd.f32 %v483, %v593
        %v615 = vadd.f32 %v486, %v601
        %v616 = vadd.f32 %v491, %v594
        %v617 = vadd.f32 %v494, %v602
        %v618 = vadd.f32 %v499, %v595
        %v619 = vadd.f32 %v502, %v603
        %620 = vrot.lane.b32.xlu0 %v443, 80
        %v621 = vpop.permute.xlu0 %620
        %622 = vrot.lane.b32.xlu0 %v446, 80
        %v623 = vpop.permute.xlu0 %622
        %624 = vrot.lane.b32.xlu0 %v451, 80
        %v625 = vpop.permute.xlu0 %624
        %626 = vrot.lane.b32.xlu0 %v454, 80
        %v627 = vpop.permute.xlu0 %626
        %628 = vrot.lane.b32.xlu0 %v459, 80
        %v629 = vpop.permute.xlu0 %628
        %630 = vrot.lane.b32.xlu0 %v462, 80
        %v631 = vpop.permute.xlu0 %630
        %632 = vrot.lane.b32.xlu0 %v467, 80
        %v633 = vpop.permute.xlu0 %632
        %634 = vrot.lane.b32.xlu0 %v470, 80
        %v635 = vpop.permute.xlu0 %634
        %636 = vrot.lane.b32.xlu0 %v475, 80
        %v637 = vpop.permute.xlu0 %636
        %638 = vrot.lane.b32.xlu0 %v478, 80
        %v639 = vpop.permute.xlu0 %638
        %640 = vrot.lane.b32.xlu0 %v483, 80
        %v641 = vpop.permute.xlu0 %640
        %642 = vrot.lane.b32.xlu0 %v486, 80
        %v643 = vpop.permute.xlu0 %642
        %644 = vrot.lane.b32.xlu0 %v491, 80
        %v645 = vpop.permute.xlu0 %644
        %646 = vrot.lane.b32.xlu0 %v494, 80
        %v647 = vpop.permute.xlu0 %646
        %648 = vrot.lane.b32.xlu0 %v499, 80
        %v649 = vpop.permute.xlu0 %648
        %650 = vrot.lane.b32.xlu0 %v502, 80
        %v651 = vpop.permute.xlu0 %650
        %v668 = vrot.slane %v621, 2
        %v669 = vrot.slane %v625, 2
        %v670 = vrot.slane %v629, 2
        %v671 = vrot.slane %v633, 2
        %v672 = vrot.slane %v637, 2
        %v673 = vrot.slane %v641, 2
        %v674 = vrot.slane %v645, 2
        %v675 = vrot.slane %v649, 2
        %v676 = vrot.slane %v623, 2
        %v677 = vrot.slane %v627, 2
        %v678 = vrot.slane %v631, 2
        %v679 = vrot.slane %v635, 2
        %v680 = vrot.slane %v639, 2
        %v681 = vrot.slane %v643, 2
        %v682 = vrot.slane %v647, 2
        %v683 = vrot.slane %v651, 2
        %vm684 = vcmp.lt.s32.totalorder %v586, 6
        %v685 = vsel %vm684, %v668, %v676
        %v686 = vsel %vm684, %v669, %v677
        %v687 = vsel %vm684, %v670, %v678
        %v688 = vsel %vm684, %v671, %v679
        %v689 = vsel %vm684, %v672, %v680
        %v690 = vsel %vm684, %v673, %v681
        %v691 = vsel %vm684, %v674, %v682
        %v692 = vsel %vm684, %v675, %v683
        %v693 = vsel %vm684, %v676, %v668
        %v694 = vsel %vm684, %v677, %v669
        %v695 = vsel %vm684, %v678, %v670
        %v696 = vsel %vm684, %v679, %v671
        %v697 = vsel %vm684, %v680, %v672
        %v698 = vsel %vm684, %v681, %v673
        %v699 = vsel %vm684, %v682, %v674
        %v700 = vsel %vm684, %v683, %v675
        %v701 = vadd.f32 %v604, %v685
        %v702 = vadd.f32 %v605, %v693
        %v703 = vadd.f32 %v606, %v686
        %v704 = vadd.f32 %v607, %v694
        %v705 = vadd.f32 %v608, %v687
        %v706 = vadd.f32 %v609, %v695
        %v707 = vadd.f32 %v610, %v688
        %v708 = vadd.f32 %v611, %v696
        %v709 = vadd.f32 %v612, %v689
        %v710 = vadd.f32 %v613, %v697
        %v711 = vadd.f32 %v614, %v690
        %v712 = vadd.f32 %v615, %v698
        %v713 = vadd.f32 %v616, %v691
        %v714 = vadd.f32 %v617, %v699
        %v715 = vadd.f32 %v618, %v692
        %v716 = vadd.f32 %v619, %v700
        %717 = vrot.lane.b32.xlu0 %v443, 56
        %v718 = vpop.permute.xlu0 %717
        %719 = vrot.lane.b32.xlu0 %v446, 56
        %v720 = vpop.permute.xlu0 %719
        %721 = vrot.lane.b32.xlu0 %v451, 56
        %v722 = vpop.permute.xlu0 %721
        %723 = vrot.lane.b32.xlu0 %v454, 56
        %v724 = vpop.permute.xlu0 %723
        %725 = vrot.lane.b32.xlu0 %v459, 56
        %v726 = vpop.permute.xlu0 %725
        %727 = vrot.lane.b32.xlu0 %v462, 56
        %v728 = vpop.permute.xlu0 %727
        %729 = vrot.lane.b32.xlu0 %v467, 56
        %v730 = vpop.permute.xlu0 %729
        %731 = vrot.lane.b32.xlu0 %v470, 56
        %v732 = vpop.permute.xlu0 %731
        %733 = vrot.lane.b32.xlu0 %v475, 56
        %v734 = vpop.permute.xlu0 %733
        %735 = vrot.lane.b32.xlu0 %v478, 56
        %v736 = vpop.permute.xlu0 %735
        %737 = vrot.lane.b32.xlu0 %v483, 56
        %v738 = vpop.permute.xlu0 %737
        %739 = vrot.lane.b32.xlu0 %v486, 56
        %v740 = vpop.permute.xlu0 %739
        %741 = vrot.lane.b32.xlu0 %v491, 56
        %v742 = vpop.permute.xlu0 %741
        %743 = vrot.lane.b32.xlu0 %v494, 56
        %v744 = vpop.permute.xlu0 %743
        %745 = vrot.lane.b32.xlu0 %v499, 56
        %v746 = vpop.permute.xlu0 %745
        %747 = vrot.lane.b32.xlu0 %v502, 56
        %v748 = vpop.permute.xlu0 %747
        %v765 = vrot.slane %v718, 3
        %v766 = vrot.slane %v722, 3
        %v767 = vrot.slane %v726, 3
        %v768 = vrot.slane %v730, 3
        %v769 = vrot.slane %v734, 3
        %v770 = vrot.slane %v738, 3
        %v771 = vrot.slane %v742, 3
        %v772 = vrot.slane %v746, 3
        %v773 = vrot.slane %v720, 3
        %v774 = vrot.slane %v724, 3
        %v775 = vrot.slane %v728, 3
        %v776 = vrot.slane %v732, 3
        %v777 = vrot.slane %v736, 3
        %v778 = vrot.slane %v740, 3
        %v779 = vrot.slane %v744, 3
        %v780 = vrot.slane %v748, 3
        %vm781 = vcmp.lt.s32.totalorder %v586, 5
        %v782 = vsel %vm781, %v765, %v773
        %v783 = vsel %vm781, %v766, %v774
        %v784 = vsel %vm781, %v767, %v775
        %v785 = vsel %vm781, %v768, %v776
        %v786 = vsel %vm781, %v769, %v777
        %v787 = vsel %vm781, %v770, %v778
        %v788 = vsel %vm781, %v771, %v779
        %v789 = vsel %vm781, %v772, %v780
        %v790 = vsel %vm781, %v773, %v765
        %v791 = vsel %vm781, %v774, %v766
        %v792 = vsel %vm781, %v775, %v767
        %v793 = vsel %vm781, %v776, %v768
        %v794 = vsel %vm781, %v777, %v769
        %v795 = vsel %vm781, %v778, %v770
        %v796 = vsel %vm781, %v779, %v771
        %v797 = vsel %vm781, %v780, %v772
        %v798 = vadd.f32 %v701, %v782
        %v799 = vadd.f32 %v702, %v790
        %v800 = vadd.f32 %v703, %v783
        %v801 = vadd.f32 %v704, %v791
        %v802 = vadd.f32 %v705, %v784
        %v803 = vadd.f32 %v706, %v792
        %v804 = vadd.f32 %v707, %v785
        %v805 = vadd.f32 %v708, %v793
        %v806 = vadd.f32 %v709, %v786
        %v807 = vadd.f32 %v710, %v794
        %v808 = vadd.f32 %v711, %v787
        %v809 = vadd.f32 %v712, %v795
        %v810 = vadd.f32 %v713, %v788
        %v811 = vadd.f32 %v714, %v796
        %v812 = vadd.f32 %v715, %v789
        %v813 = vadd.f32 %v716, %v797
        %814 = vrot.lane.b32.xlu0 %v443, 32
        %v815 = vpop.permute.xlu0 %814
        %816 = vrot.lane.b32.xlu0 %v446, 32
        %v817 = vpop.permute.xlu0 %816
        %818 = vrot.lane.b32.xlu0 %v451, 32
        %v819 = vpop.permute.xlu0 %818
        %820 = vrot.lane.b32.xlu0 %v454, 32
        %v821 = vpop.permute.xlu0 %820
        %822 = vrot.lane.b32.xlu0 %v459, 32
        %v823 = vpop.permute.xlu0 %822
        %824 = vrot.lane.b32.xlu0 %v462, 32
        %v825 = vpop.permute.xlu0 %824
        %826 = vrot.lane.b32.xlu0 %v467, 32
        %v827 = vpop.permute.xlu0 %826
        %828 = vrot.lane.b32.xlu0 %v470, 32
        %v829 = vpop.permute.xlu0 %828
        %830 = vrot.lane.b32.xlu0 %v475, 32
        %v831 = vpop.permute.xlu0 %830
        %832 = vrot.lane.b32.xlu0 %v478, 32
        %v833 = vpop.permute.xlu0 %832
        %834 = vrot.lane.b32.xlu0 %v483, 32
        %v835 = vpop.permute.xlu0 %834
        %836 = vrot.lane.b32.xlu0 %v486, 32
        %v837 = vpop.permute.xlu0 %836
        %838 = vrot.lane.b32.xlu0 %v491, 32
        %v839 = vpop.permute.xlu0 %838
        %840 = vrot.lane.b32.xlu0 %v494, 32
        %v841 = vpop.permute.xlu0 %840
        %842 = vrot.lane.b32.xlu0 %v499, 32
        %v843 = vpop.permute.xlu0 %842
        %844 = vrot.lane.b32.xlu0 %v502, 32
        %v845 = vpop.permute.xlu0 %844
        %v862 = vrot.slane %v815, 4
        %v863 = vrot.slane %v819, 4
        %v864 = vrot.slane %v823, 4
        %v865 = vrot.slane %v827, 4
        %v866 = vrot.slane %v831, 4
        %v867 = vrot.slane %v835, 4
        %v868 = vrot.slane %v839, 4
        %v869 = vrot.slane %v843, 4
        %v870 = vrot.slane %v817, 4
        %v871 = vrot.slane %v821, 4
        %v872 = vrot.slane %v825, 4
        %v873 = vrot.slane %v829, 4
        %v874 = vrot.slane %v833, 4
        %v875 = vrot.slane %v837, 4
        %v876 = vrot.slane %v841, 4
        %v877 = vrot.slane %v845, 4
        %vm878 = vcmp.lt.s32.totalorder %v586, 4
        %v879 = vsel %vm878, %v862, %v870
        %v880 = vsel %vm878, %v863, %v871
        %v881 = vsel %vm878, %v864, %v872
        %v882 = vsel %vm878, %v865, %v873
        %v883 = vsel %vm878, %v866, %v874
        %v884 = vsel %vm878, %v867, %v875
        %v885 = vsel %vm878, %v868, %v876
        %v886 = vsel %vm878, %v869, %v877
        %v887 = vsel %vm878, %v870, %v862
        %v888 = vsel %vm878, %v871, %v863
        %v889 = vsel %vm878, %v872, %v864
        %v890 = vsel %vm878, %v873, %v865
        %v891 = vsel %vm878, %v874, %v866
        %v892 = vsel %vm878, %v875, %v867
        %v893 = vsel %vm878, %v876, %v868
        %v894 = vsel %vm878, %v877, %v869
        %v895 = vadd.f32 %v798, %v879
        %v896 = vadd.f32 %v799, %v887
        %v897 = vadd.f32 %v800, %v880
        %v898 = vadd.f32 %v801, %v888
        %v899 = vadd.f32 %v802, %v881
        %v900 = vadd.f32 %v803, %v889
        %v901 = vadd.f32 %v804, %v882
        %v902 = vadd.f32 %v805, %v890
        %v903 = vadd.f32 %v806, %v883
        %v904 = vadd.f32 %v807, %v891
        %v905 = vadd.f32 %v808, %v884
        %v906 = vadd.f32 %v809, %v892
        %v907 = vadd.f32 %v810, %v885
        %v908 = vadd.f32 %v811, %v893
        %v909 = vadd.f32 %v812, %v886
        %v910 = vadd.f32 %v813, %v894
        %v911 = vld [vmem:[%s4] sm:$0x1]
        %v912 = vlaneseq
        %v913 = vshrl.u32 %v912, 7
        %v914 = vsub.s32 0, %v913
        %v915 = vrot.slane %v911, %v914
        %v916 = vadd.f32 %v895, %v915
        %v917 = vadd.f32 %v896, %v915
        %v918 = vadd.f32 %v897, %v915
        %v919 = vadd.f32 %v898, %v915
        %v920 = vadd.f32 %v899, %v915
        %v921 = vadd.f32 %v900, %v915
        %v922 = vadd.f32 %v901, %v915
        %v923 = vadd.f32 %v902, %v915
        %v924 = vadd.f32 %v903, %v915
        %v925 = vadd.f32 %v904, %v915
        %v926 = vadd.f32 %v905, %v915
        %v927 = vadd.f32 %v906, %v915
        %v928 = vadd.f32 %v907, %v915
        %v929 = vadd.f32 %v908, %v915
        %v930 = vadd.f32 %v909, %v915
        %v931 = vadd.f32 %v910, %v915
        %v932 = vmax.f32 %v916, 0.0
        %v933 = vmax.f32 %v917, 0.0
        %v934 = vmax.f32 %v918, 0.0
        %v935 = vmax.f32 %v919, 0.0
        %v936 = vmax.f32 %v920, 0.0
        %v937 = vmax.f32 %v921, 0.0
        %v938 = vmax.f32 %v922, 0.0
        %v939 = vmax.f32 %v923, 0.0
        %v940 = vmax.f32 %v924, 0.0
        %v941 = vmax.f32 %v925, 0.0
        %v942 = vmax.f32 %v926, 0.0
        %v943 = vmax.f32 %v927, 0.0
        %v944 = vmax.f32 %v928, 0.0
        %v945 = vmax.f32 %v929, 0.0
        %v946 = vmax.f32 %v930, 0.0
        %v947 = vmax.f32 %v931, 0.0
        %v948 = vld [vmem:[%s2] sm:$0xff]
        %v949 = vld [vmem:[%s2 + $0x8] sm:$0xff]
        %v950 = vmul.f32 %v932, %v948
        %v951 = vmul.f32 %v933, %v949
        %v952 = vmul.f32 %v934, %v948
        %v953 = vmul.f32 %v935, %v949
        %v954 = vmul.f32 %v936, %v948
        %v955 = vmul.f32 %v937, %v949
        %v956 = vmul.f32 %v938, %v948
        %v957 = vmul.f32 %v939, %v949
        %v958 = vmul.f32 %v940, %v948
        %v959 = vmul.f32 %v941, %v949
        %v960 = vmul.f32 %v942, %v948
        %v961 = vmul.f32 %v943, %v949
        %v962 = vmul.f32 %v944, %v948
        %v963 = vmul.f32 %v945, %v949
        %v964 = vmul.f32 %v946, %v948
        %v965 = vmul.f32 %v947, %v949
        %vm966 = vcmask 195584
        %v967 = vsel %vm966, %v950, -inf
        %v968 = vsel %vm966, %v951, -inf
        %v969 = vmax.f32 %v967, %v968
        %v970 = vrot.slane %v969, 4
        %v971 = vmax.f32 %v969, %v970
        %v972 = vrot.slane %v971, 2
        %v973 = vmax.f32 %v971, %v972
        %v974 = vrot.slane %v973, 1
        %v975 = vmax.f32 %v973, %v974
        %v976 = vsel %vm966, %v952, -inf
        %v977 = vsel %vm966, %v953, -inf
        %v978 = vmax.f32 %v976, %v977
        %v979 = vrot.slane %v978, 4
        %v980 = vmax.f32 %v978, %v979
        %v981 = vrot.slane %v980, 2
        %v982 = vmax.f32 %v980, %v981
        %v983 = vrot.slane %v982, 1
        %v984 = vmax.f32 %v982, %v983
        %v985 = vsel %vm966, %v954, -inf
        %v986 = vsel %vm966, %v955, -inf
        %v987 = vmax.f32 %v985, %v986
        %v988 = vrot.slane %v987, 4
        %v989 = vmax.f32 %v987, %v988
        %v990 = vrot.slane %v989, 2
        %v991 = vmax.f32 %v989, %v990
        %v992 = vrot.slane %v991, 1
        %v993 = vmax.f32 %v991, %v992
        %v994 = vsel %vm966, %v956, -inf
        %v995 = vsel %vm966, %v957, -inf
        %v996 = vmax.f32 %v994, %v995
        %v997 = vrot.slane %v996, 4
        %v998 = vmax.f32 %v996, %v997
        %v999 = vrot.slane %v998, 2
        %v1000 = vmax.f32 %v998, %v999
        %v1001 = vrot.slane %v1000, 1
        %v1002 = vmax.f32 %v1000, %v1001
        %v1003 = vsel %vm966, %v958, -inf
        %v1004 = vsel %vm966, %v959, -inf
        %v1005 = vmax.f32 %v1003, %v1004
        %v1006 = vrot.slane %v1005, 4
        %v1007 = vmax.f32 %v1005, %v1006
        %v1008 = vrot.slane %v1007, 2
        %v1009 = vmax.f32 %v1007, %v1008
        %v1010 = vrot.slane %v1009, 1
        %v1011 = vmax.f32 %v1009, %v1010
        %v1012 = vsel %vm966, %v960, -inf
        %v1013 = vsel %vm966, %v961, -inf
        %v1014 = vmax.f32 %v1012, %v1013
        %v1015 = vrot.slane %v1014, 4
        %v1016 = vmax.f32 %v1014, %v1015
        %v1017 = vrot.slane %v1016, 2
        %v1018 = vmax.f32 %v1016, %v1017
        %v1019 = vrot.slane %v1018, 1
        %v1020 = vmax.f32 %v1018, %v1019
        %v1021 = vsel %vm966, %v962, -inf
        %v1022 = vsel %vm966, %v963, -inf
        %v1023 = vmax.f32 %v1021, %v1022
        %v1024 = vrot.slane %v1023, 4
        %v1025 = vmax.f32 %v1023, %v1024
        %v1026 = vrot.slane %v1025, 2
        %v1027 = vmax.f32 %v1025, %v1026
        %v1028 = vrot.slane %v1027, 1
        %v1029 = vmax.f32 %v1027, %v1028
        %v1030 = vsel %vm966, %v964, -inf
        %v1031 = vsel %vm966, %v965, -inf
        %v1032 = vmax.f32 %v1030, %v1031
        %v1033 = vrot.slane %v1032, 4
        %v1034 = vmax.f32 %v1032, %v1033
        %v1035 = vrot.slane %v1034, 2
        %v1036 = vmax.f32 %v1034, %v1035
        %v1037 = vrot.slane %v1036, 1
        %v1038 = vmax.f32 %v1036, %v1037
        %v1039 = vld [vmem:[%s3] sm:$0xff]
        %v1040 = vld [vmem:[%s3 + $0x8] sm:$0xff]
        %v1041 = vld [vmem:[%s3 + $0x10] sm:$0xff]
        %v1042 = vld [vmem:[%s4 + $0x1] sm:$0x1]
        %v1043 = vlaneseq
        %v1044 = vshrl.u32 %v1043, 7
        %v1045 = vsub.s32 0, %v1044
        %v1046 = vrot.slane %v1042, %v1045
        %vm1055 = vcmask 1041409
        %v1056 = vsel %vm1055, %v984, %v975
        %vm1057 = vcmask 1042434
        %v1058 = vsel %vm1057, %v993, %v1056
        %vm1059 = vcmask 1043459
        %v1060 = vsel %vm1059, %v1002, %v1058
        %vm1061 = vcmask 1044484
        %v1062 = vsel %vm1061, %v1011, %v1060
        %vm1063 = vcmask 1045509
        %v1064 = vsel %vm1063, %v1020, %v1062
        %vm1065 = vcmask 1046534
        %v1066 = vsel %vm1065, %v1029, %v1064
        %vm1067 = vcmask 1047559
        %v1068 = vsel %vm1067, %v1038, %v1066
        %v1069 = vsel %vm966, %v1068, 0
        %1071 = vmatprep.subr.mxu0 0.0
        %1072 = vmatpush1.msra.mxu0 %v1039
        %1073 = vmatprep.subr.mxu0 0.0
        %1074 = vmatpush1.msra.mxu0 %v1040
        %1075 = vmatprep.subr.mxu0 0.0
        %1076 = vmatpush1.msra.mxu0 %v1041
        %1077 = vmatprep.subr.mxu0 0.0
        %1078 = vmatpush1.msra.mxu0 0.0
        %1079 = vmatprep.subr.mxu0 0.0
        %1080 = vmatpush1.msra.mxu0 0.0
        %1081 = vmatprep.subr.mxu0 0.0
        %1082 = vmatpush1.msra.mxu0 0.0
        %1083 = vmatprep.subr.mxu0 0.0
        %1084 = vmatpush1.msra.mxu0 0.0
        %1085 = vmatprep.subr.mxu0 0.0
        %1086 = vmatpush1.msra.mxu0 0.0
        %1087 = vmatprep.subr.mxu0 0.0
        %1088 = vmatpush1.msra.mxu0 0.0
        %1089 = vmatprep.subr.mxu0 0.0
        %1090 = vmatpush1.msra.mxu0 0.0
        %1091 = vmatprep.subr.mxu0 0.0
        %1092 = vmatpush1.msra.mxu0 0.0
        %1093 = vmatprep.subr.mxu0 0.0
        %1094 = vmatpush1.msra.mxu0 0.0
        %1095 = vmatprep.subr.mxu0 0.0
        %1096 = vmatpush1.msra.mxu0 0.0
        %1097 = vmatprep.subr.mxu0 0.0
        %1098 = vmatpush1.msra.mxu0 0.0
        %1099 = vmatprep.subr.mxu0 0.0
        %1100 = vmatpush1.msra.mxu0 0.0
        %1101 = vmatprep.subr.mxu0 0.0
        %1102 = vmatpush1.msra.mxu0 0.0
        %1103 = vmatprep.subr.mxu0 0.0
        %1104 = vmatpush1.msra.mxu0 0.0
        %1105 = vmatprep.subr.mxu0 0.0
        %1106 = vmatpush1.msra.mxu0 0.0
        %1107 = vmatprep.subr.mxu0 0.0
        %1108 = vmatpush1.msra.mxu0 0.0
        %1109 = vmatprep.subr.mxu0 0.0
        %1110 = vmatpush1.msra.mxu0 0.0
        %1111 = vmatprep.subr.mxu0 0.0
        %1112 = vmatpush1.msra.mxu0 0.0
        %1113 = vmatprep.subr.mxu0 0.0
        %1114 = vmatpush1.msra.mxu0 0.0
        %1115 = vmatprep.subr.mxu0 0.0
        %1116 = vmatpush1.msra.mxu0 0.0
        %1117 = vmatprep.subr.mxu0 0.0
        %1118 = vmatpush1.msra.mxu0 0.0
        %1119 = vmatprep.subr.mxu0 0.0
        %1120 = vmatpush1.msra.mxu0 0.0
        %1121 = vmatprep.subr.mxu0 0.0
        %1122 = vmatpush1.msra.mxu0 0.0
        %1123 = vmatprep.subr.mxu0 0.0
        %1124 = vmatpush1.msra.mxu0 0.0
        %1125 = vmatprep.subr.mxu0 0.0
        %1126 = vmatpush1.msra.mxu0 0.0
        %1127 = vmatprep.subr.mxu0 0.0
        %1128 = vmatpush1.msra.mxu0 0.0
        %1129 = vmatprep.subr.mxu0 0.0
        %1130 = vmatpush1.msra.mxu0 0.0
        %1131 = vmatprep.subr.mxu0 0.0
        %1132 = vmatpush1.msra.mxu0 0.0
        %1133 = vmatprep.subr.mxu0 0.0
        %1134 = vmatpush1.msra.mxu0 0.0
        %1135 = vmatprep.mubr.f32.mxu0 0.0
        %1136 = vmatmul.mubr.f32.gmra.mrb[0].mxu0 %v1069
        %v1137 = vpop.f32.mrb[0].mxu0
        %v1138 = vadd.f32 %v1046, %v1137
        %v1139 = vpop.f32.mrb[0].mxu0
        %1140 = vdwg.mxu0
        %1141 = vst [vmem:[%s220] sm:$0xff] %v1138
        %s1142 = sand.u32 %s137, 1
        %s1143 = scalar_lea.sflag [#allocation3], %s1142
        %s1144 = sand.u32 %s137, 1
        %s1145 = smul.addr %s1144, 8
        %s1146 = scalar_lea.vmem [#allocation2], %s1145
        // Predicated region
        $region41: #{tpu_custom_call.1} parent=39 // pred_check
          %p1147 = pneg %p147
        $region42: #{tpu_custom_call.1} parent=39 // pred_check_branch
          %1149 = sbr.rel (%p1147) target = $region44
        $region43: #{tpu_custom_call.1} parent=39 // pred_region
          %s1151 = ssub.s32 128, 128
          %1152 = vsyncadd %s1143, %s1151
          %s1153 = smul.addr %s19, 128
          %s1154 = scalar_lea.hbm %s5, %s1153
          %s1156 = sshll.u32 %s1146, 4
          %s1157 = int_to_ptr.vmem [resolvable:$true] %s1156
          %1159 = dma.vmem_to_hbm [thread:$0]  %s1157, 128, %s1154, %s1143
        $region44: #{tpu_custom_call.1} parent=39 // pred_fallthru
          _
      $region40: #{tpu_custom_call.1} parent=5 // pred_fallthru
        _
      %p1160 = scmp.le.s32.totalorder 2, %s14
      // Predicated region
      $region45: #{tpu_custom_call.1} parent=5 // pred_check
        %p1161 = pneg %p1160
      $region46: #{tpu_custom_call.1} parent=5 // pred_check_branch
        %1163 = sbr.rel (%p1161) target = $region48
      $region47: #{tpu_custom_call.1} parent=5 // pred_region
        %s1164 = ssub.s32 %s14, 2
        // Predicated region
        $region49: #{tpu_custom_call.1} parent=47 // pred_check
          %p1165 = pneg %p153
        $region50: #{tpu_custom_call.1} parent=47 // pred_check_branch
          %1167 = sbr.rel (%p1165) target = $region52
        $region51: #{tpu_custom_call.1} parent=47 // pred_region
          %s1168 = sand.u32 %s138, 1
          %s1169 = scalar_lea.sflag [#allocation3], %s1168
          %s1170 = sand.u32 %s138, 1
          %s1171 = smul.addr %s1170, 8
          %s1172 = scalar_lea.vmem [#allocation2], %s1171
          %1173 = dma.done %s1169, 128
        $region52: #{tpu_custom_call.1} parent=47 // pred_fallthru
          _
      $region48: #{tpu_custom_call.1} parent=5 // pred_fallthru
        _
    $region6: #{tpu_custom_call.1} parent=1 // loop_footer
      %s18 = sadd.s32 1, %s14
    $region7: #{tpu_custom_call.1} parent=1 // loop_footer_branch
      %13 = sbr.rel target = $region3
    $region8: #{tpu_custom_call.1} parent=1 // loop_exit
      _
    %1174 = vsyncpa [#allocation3], 1
    %s1175 = scalar_lea.sflag [#allocation3], 1
    %1176 = vsyncpa %s1175, 1

</llo_original>
